<compile_context>
chip_gen: v5e
topology: v5e:2x2
jax: 0.10.0
libtpu: 0.0.40
codegen_flags: <defaults>
</compile_context>

<pallas_src>
import functools

import jax
import jax.numpy as jnp
from jax.experimental import pallas as pl
from jax.experimental.pallas import tpu as pltpu

_MiB = 1024 * 1024


def _normalize_kernel(x_ref, mean_ref, inv_ref, o_ref):
    # x_ref / o_ref: (rows_b, lanes_b) tile.
    # mean_ref / inv_ref: (rows_b, 1) (per-row params) or (1, lanes_b)
    # (per-lane params); jnp broadcasting handles both layouts.
    x = x_ref[...]
    o_ref[...] = ((x - mean_ref[...]) * inv_ref[...]).astype(o_ref.dtype)


def _vmem_plan():
    """Pick (target_block_bytes, vmem_limit_bytes) for this TPU generation."""
    try:
        cap = int(pltpu.get_tpu_info().vmem_capacity_bytes)
    except Exception:  # noqa: BLE001 - hardware query best-effort
        cap = 0
    if cap and cap <= 64 * _MiB:
        # v7x-class: smaller VMEM but ~3.2 TB/s HBM -> bigger blocks to hide
        # the ~0.35us/step overhead. 2x(8 MiB in + 8 MiB out) = 32 MiB < 40.
        return 8 * _MiB, 40 * _MiB
    if cap >= 128 * _MiB:
        # v5e/v6e: streaming plateaus around 4 MiB tiles; raise the scoped
        # limit past the 16 MiB (v5e) / 32 MiB (v6e) defaults explicitly.
        return 4 * _MiB, 64 * _MiB
    # Unknown chip: conservative sizing that fits every generation.
    return 4 * _MiB, 32 * _MiB


def _choose_blocks(rows, lanes, itemsize, target_bytes, min_steps=4):
    """(rows_b, lanes_b): lane-dense, dtype-packed, ~target_bytes blocks."""
    sub = 8 * max(1, 4 // itemsize)  # sublane packing: f32->8, bf16->16, i8->32

    # Lane block: full width when a `sub`-row slab fits the byte budget,
    # otherwise a multiple of 128 (unmasked vector stores).
    if lanes <= 128 or sub * lanes * itemsize <= target_bytes:
        lanes_b = lanes
    else:
        lanes_b = max(128, min(lanes,
                               (target_bytes // (sub * itemsize)) // 128 * 128))

    # Sublane block: multiple of `sub` (or the full row count for tiny inputs).
    if rows <= sub:
        rows_b = rows
    else:
        rows_b = (target_bytes // max(1, lanes_b * itemsize)) // sub * sub
        rows_b = int(max(sub, min(rows_b, rows)))

    # Only insist on multiple grid steps when there is enough work that each
    # resulting block is still >= ~1 MiB (megacore / pipeline overlap).
    total_bytes = rows * lanes * itemsize
    want_steps = min_steps if total_bytes >= min_steps * _MiB else 1

    def n_steps(rb, lb):
        return pl.cdiv(rows, rb) * pl.cdiv(lanes, lb)

    # Prefer splitting rows (keeps full-row, fully contiguous DMAs) ...
    while n_steps(rows_b, lanes_b) < want_steps and rows_b > sub:
        new_rows_b = max(sub, ((rows_b // 2) // sub) * sub)
        if new_rows_b == rows_b:
            break
        rows_b = new_rows_b
    # ... and only split the lane axis if rows alone cannot provide steps.
    while n_steps(rows_b, lanes_b) < want_steps and lanes_b > 128:
        new_lanes_b = max(128, ((lanes_b // 2) // 128) * 128)
        if new_lanes_b == lanes_b:
            break
        lanes_b = new_lanes_b

    return rows_b, lanes_b


@functools.partial(jax.jit, static_argnames=("lane_channels", "donate_input"))
def _normalize_forward(x, mean_p, inv_p, *, lane_channels, donate_input):
    B, C, H, W = x.shape
    hw = H * W
    itemsize = jnp.dtype(x.dtype).itemsize

    if lane_channels:
        rows, lanes = B, C * hw          # small-spatial: channels on lanes
    else:
        rows, lanes = B * C, hw          # standard: per-row channel params
    x2 = x.reshape(rows, lanes)

    target_bytes, vmem_limit = _vmem_plan()
    rows_b, lanes_b = _choose_blocks(rows, lanes, itemsize, target_bytes)
    grid = (pl.cdiv(rows, rows_b), pl.cdiv(lanes, lanes_b))

    if lane_channels:
        param_spec = pl.BlockSpec((1, lanes_b), lambda i, j: (0, j))
    else:
        param_spec = pl.BlockSpec((rows_b, 1), lambda i, j: (i, 0))

    param_bytes = 2 * int(mean_p.size) * 4

    out2 = pl.pallas_call(
        _normalize_kernel,
        out_shape=jax.ShapeDtypeStruct((rows, lanes), x.dtype),
        grid=grid,
        in_specs=[
            pl.BlockSpec((rows_b, lanes_b), lambda i, j: (i, j)),
            param_spec,
            param_spec,
        ],
        out_specs=pl.BlockSpec((rows_b, lanes_b), lambda i, j: (i, j)),
        input_output_aliases=({0: 0} if donate_input else {}),
        compiler_params=pltpu.CompilerParams(
            dimension_semantics=("parallel", "parallel"),
            vmem_limit_bytes=vmem_limit,
        ),
        cost_estimate=pl.CostEstimate(
            flops=2 * rows * lanes,
            transcendentals=0,
            bytes_accessed=2 * rows * lanes * itemsize + param_bytes,
        ),
    )(x2, mean_p, inv_p)

    return out2.reshape(B, C, H, W)


class NormalizeLayer:
    """(input - means[c]) / sds[c] on NCHW input (matches the PyTorch module)."""

    def __init__(self, means, sds):
        means = jnp.asarray(means, jnp.float32).reshape(-1)
        sds = jnp.asarray(sds, jnp.float32).reshape(-1)
        if means.shape != sds.shape:
            raise ValueError("means and sds must have the same number of channels")
        self._mean_c = means
        self._inv_c = 1.0 / sds
        self._param_cache = {}   # (B, C, hw, lane_channels) -> (mean_p, inv_p)

    def _params(self, B, C, hw, lane_channels):
        key = (B, C, hw, lane_channels)
        params = self._param_cache.get(key)
        if params is None:
            if lane_channels:
                mean_p = jnp.repeat(self._mean_c, hw).reshape(1, C * hw)
                inv_p = jnp.repeat(self._inv_c, hw).reshape(1, C * hw)
            else:
                mean_p = jnp.tile(self._mean_c, B).reshape(B * C, 1)
                inv_p = jnp.tile(self._inv_c, B).reshape(B * C, 1)
            params = (jax.device_put(mean_p), jax.device_put(inv_p))
            self._param_cache[key] = params
        return params

    def __call__(self, x, *, donate_input: bool = False):
        B, C, H, W = x.shape
        if self._mean_c.shape[0] != C:
            raise ValueError(f"expected {self._mean_c.shape[0]} channels, got {C}")
        hw = H * W
        lane_channels = hw < 128   # keep output lane width >= 128 (unmasked vst)
        mean_p, inv_p = self._params(B, C, hw, lane_channels)
        return _normalize_forward(x, mean_p, inv_p,
                                  lane_channels=lane_channels,
                                  donate_input=donate_input)


if __name__ == "__main__":
    key = jax.random.PRNGKey(0)

    # Deterministic "dataset statistics" (one value per channel, as in __init__).
    means = [0.485, 0.456, 0.406, 0.5]
    sds = [0.229, 0.224, 0.225, 0.25]
    layer = NormalizeLayer(means, sds)

    means_a = jnp.asarray(means, jnp.float32)
    sds_a = jnp.asarray(sds, jnp.float32)

    # Main path: H*W >= 128 -> (B*C, H*W) layout with per-row params.
    B, C, H, W = 2, 4, 16, 16
    k1, k2 = jax.random.split(key)
    x = jax.random.normal(k1, (B, C, H, W), dtype=jnp.float32)
    out = jax.block_until_ready(layer(x))
    ref = (x - means_a[None, :, None, None]) / sds_a[None, :, None, None]
    assert out.shape == x.shape and out.dtype == x.dtype
    assert jnp.allclose(out, ref, rtol=1e-5, atol=1e-6)

    # Small-spatial path: H*W < 128 -> (B, C*H*W) layout with per-lane params.
    Hs = Ws = 8
    xs = jax.random.normal(k2, (B, C, Hs, Ws), dtype=jnp.float32)
    outs = jax.block_until_ready(layer(xs))
    refs = (xs - means_a[None, :, None, None]) / sds_a[None, :, None, None]
    assert outs.shape == xs.shape and outs.dtype == xs.dtype
    assert jnp.allclose(outs, refs, rtol=1e-5, atol=1e-6)

    print("KERNEL_OK")
</pallas_src>

<mosaic_0001>
module attributes {stable_mosaic.version = 11 : i64} {
  func.func @_normalize_kernel(%arg0: i32, %arg1: i32, %arg2: memref<8x256xf32, #tpu.memory_space<vmem>>, %arg3: memref<8x1xf32, #tpu.memory_space<vmem>>, %arg4: memref<8x1xf32, #tpu.memory_space<vmem>>, %arg5: memref<8x256xf32, #tpu.memory_space<vmem>>) attributes {dimension_semantics = [#tpu.dimension_semantics<parallel>, #tpu.dimension_semantics<parallel>], iteration_bounds = array<i64: 1, 1>, scalar_prefetch = 0 : i64, scratch_operands = 0 : i64, tpu.core_type = #tpu.core_type<tc>, window_params = [{transform_indices = @transform_0, window_bounds = array<i64: 8, 256>}, {transform_indices = @transform_1, window_bounds = array<i64: 8, 1>}, {transform_indices = @transform_2, window_bounds = array<i64: 8, 1>}, {transform_indices = @transform_3, window_bounds = array<i64: 8, 256>}]} {
    %c0 = arith.constant 0 : index
    %c0_0 = arith.constant 0 : index
    %0 = vector.load %arg2[%c0, %c0_0] : memref<8x256xf32, #tpu.memory_space<vmem>>, vector<8x256xf32>
    %c0_1 = arith.constant 0 : index
    %c0_2 = arith.constant 0 : index
    %1 = vector.load %arg3[%c0_1, %c0_2] : memref<8x1xf32, #tpu.memory_space<vmem>>, vector<8x1xf32>
    %2 = vector.broadcast %1 : vector<8x1xf32> to vector<8x256xf32>
    %3 = arith.subf %0, %2 : vector<8x256xf32>
    %c0_3 = arith.constant 0 : index
    %c0_4 = arith.constant 0 : index
    %4 = vector.load %arg4[%c0_3, %c0_4] : memref<8x1xf32, #tpu.memory_space<vmem>>, vector<8x1xf32>
    %5 = vector.broadcast %4 : vector<8x1xf32> to vector<8x256xf32>
    %6 = arith.mulf %3, %5 : vector<8x256xf32>
    %c0_5 = arith.constant 0 : index
    %c0_6 = arith.constant 0 : index
    %7 = vector.load %arg5[%c0_5, %c0_6] : memref<8x256xf32, #tpu.memory_space<vmem>>, vector<8x256xf32>
    tpu.vector_store %arg5[%c0_5, %c0_6], %6 {strides = array<i32>} : memref<8x256xf32, #tpu.memory_space<vmem>>, vector<8x256xf32>,
    return
  }
  func.func @transform_0(%arg0: i32, %arg1: i32) -> (i32, i32) {
    %c0_i32 = arith.constant 0 : i32
    return %arg0, %arg1 : i32, i32
  }
  func.func @transform_1(%arg0: i32, %arg1: i32) -> (i32, i32) {
    %c0_i32 = arith.constant 0 : i32
    %c0_i32_0 = arith.constant 0 : i32
    return %arg0, %c0_i32 : i32, i32
  }
  func.func @transform_2(%arg0: i32, %arg1: i32) -> (i32, i32) {
    %c0_i32 = arith.constant 0 : i32
    %c0_i32_0 = arith.constant 0 : i32
    return %arg0, %c0_i32 : i32, i32
  }
  func.func @transform_3(%arg0: i32, %arg1: i32) -> (i32, i32) {
    %c0_i32 = arith.constant 0 : i32
    return %arg0, %arg1 : i32, i32
  }
}

</mosaic_0001>

<llo_original>
// kernel: _normalize_forward.1
$region0: #{_normalize_forward.1}
  #allocation0 [shape = 'u32[]', space=smem, size = 0x4, offset = 0x4, fixed_abs, tag = 'smem constant byte address 0x4 - core index']
  #allocation1 [shape = 'u32[72,128]{1,0:T(1,128)}', space=vmem, size = 0x9000, scoped, tag = 'internal scratch']
  %s0 = inlined_call_operand.vmem [shape: f32[8,256], index: 0, kind: input, shape index: {}]
  %s1 = inlined_call_operand.vmem [shape: f32[8,1], index: 1, kind: input, shape index: {}]
  %s2 = inlined_call_operand.vmem [shape: f32[8,1], index: 2, kind: input, shape index: {}]
  %s3 = inlined_call_operand.vmem [shape: f32[8,256], index: 3, kind: output, shape index: {}]
  %s4 = sld [smem:[#allocation0]]
  $region22: #{_normalize_forward.1} parent=0
    _
  %s6 = ssub.s32 1, %s4
  %s7 = scalar_select 0, %s6, %s4
  // Predicated region
  $region2: #{_normalize_forward.1} parent=0 // pred_check
    _
  $region3: #{_normalize_forward.1} parent=0 // pred_check_branch
    %9 = sbr.rel (0) target = $region5
  $region4: #{_normalize_forward.1} parent=0 // pred_region
    _
  $region5: #{_normalize_forward.1} parent=0 // pred_fallthru
    _
  // Predicated region
  $region6: #{_normalize_forward.1} parent=0 // pred_check
    _
  $region7: #{_normalize_forward.1} parent=0 // pred_check_branch
    %11 = sbr.rel (0) target = $region9
  $region8: #{_normalize_forward.1} parent=0 // pred_region
    _
  $region9: #{_normalize_forward.1} parent=0 // pred_fallthru
    _
  // Predicated region
  $region10: #{_normalize_forward.1} parent=0 // pred_check
    _
  $region11: #{_normalize_forward.1} parent=0 // pred_check_branch
    %13 = sbr.rel (0) target = $region13
  $region12: #{_normalize_forward.1} parent=0 // pred_region
    _
  $region13: #{_normalize_forward.1} parent=0 // pred_fallthru
    _
  %v14 = vld [vmem:[%s0] sm:$0xff]
  %v15 = vld [vmem:[%s0 + $0x8] sm:$0xff]
  %v16 = vld [vmem:[%s1] sm:$0xff]
  %18 = vset.pattern.permute.xlu0 0
  %19 = vperm.xlu0 %18, %v16
  %v20 = vpop.permute.xlu0 %19
  %v22 = vsub.f32 %v14, %v20
  %v23 = vsub.f32 %v15, %v20
  %v24 = vld [vmem:[%s2] sm:$0xff]
  %26 = vset.pattern.permute.xlu0 0
  %27 = vperm.xlu0 %26, %v24
  %v28 = vpop.permute.xlu0 %27
  %v30 = vmul.f32 %v22, %v28
  %v31 = vmul.f32 %v23, %v28
  %32 = vst [vmem:[%s3] sm:$0xff] %v30
  %33 = vst [vmem:[%s3 + $0x8] sm:$0xff] %v31
  // Predicated region
  $region14: #{_normalize_forward.1} parent=0 // pred_check
    _
  $region15: #{_normalize_forward.1} parent=0 // pred_check_branch
    %35 = sbr.rel (0) target = $region17
  $region16: #{_normalize_forward.1} parent=0 // pred_region
    _
  $region17: #{_normalize_forward.1} parent=0 // pred_fallthru
    _
  // Predicated region
  $region18: #{_normalize_forward.1} parent=0 // pred_check
    _
  $region19: #{_normalize_forward.1} parent=0 // pred_check_branch
    %37 = sbr.rel (0) target = $region21
  $region20: #{_normalize_forward.1} parent=0 // pred_region
    _
  $region21: #{_normalize_forward.1} parent=0 // pred_fallthru
    _

</llo_original>
